<compile_context>
chip_gen: v5e
topology: v5e:2x2
jax: 0.10.0
libtpu: 0.0.40
codegen_flags: <defaults>
</compile_context>

<pallas_src>
import functools

import jax
import jax.numpy as jnp
from jax import lax
from jax.experimental import pallas as pl
from jax.experimental.pallas import tpu as pltpu


def _round_up(x: int, m: int) -> int:
    return (x + m - 1) // m * m


def _pick_tile(total: int, target: int, multiple: int) -> int:
    """Largest t <= target that is a multiple of `multiple` and divides `total`.
    `total` is assumed to be a positive multiple of `multiple`."""
    t = min(target, total)
    t = max(multiple, t - t % multiple)
    while total % t != 0:
        t -= multiple
    return t


# ---------------------------------------------------------------------------
# Kernels: x (tm, tk) @ wT (tk, tn) accumulated directly into o_ref (tm, tn)
# f32.  Output block index is independent of the K grid axis, so o_ref stays
# VMEM-resident across the reduction; init at k==0 (bias folded in), then +=.
# ---------------------------------------------------------------------------
def _fl_kernel_bias(x_ref, wt_ref, b_ref, o_ref):
    k = pl.program_id(2)
    partial = lax.dot_general(
        x_ref[...],
        wt_ref[...],
        dimension_numbers=(((1,), (0,)), ((), ())),
        preferred_element_type=jnp.float32,
    )

    @pl.when(k == 0)
    def _():
        o_ref[...] = partial + b_ref[...]          # bias folded into init write

    @pl.when(k > 0)
    def _():
        o_ref[...] += partial


def _fl_kernel_nobias(x_ref, wt_ref, o_ref):
    k = pl.program_id(2)
    partial = lax.dot_general(
        x_ref[...],
        wt_ref[...],
        dimension_numbers=(((1,), (0,)), ((), ())),
        preferred_element_type=jnp.float32,
    )

    @pl.when(k == 0)
    def _():
        o_ref[...] = partial

    @pl.when(k > 0)
    def _():
        o_ref[...] += partial


# ---------------------------------------------------------------------------
# One-time frozen-weight preprocessing (NOT in the per-call path).
# ---------------------------------------------------------------------------
def prepare_frozen_linear(weight, bias=None, *, weight_dtype=jnp.float32):
    """Transpose the frozen (N, K) weight to (K, N), pad to 128-multiples and
    cast.  Do this once per module; the result is reused across forward calls.
    """
    N, K = weight.shape
    Kp, Np = _round_up(K, 128), _round_up(N, 128)

    wt = jnp.swapaxes(weight, 0, 1)                              # (K, N)
    if (Kp, Np) != (K, N):
        wt = jnp.pad(wt, ((0, Kp - K), (0, Np - N)))
    wt = wt.astype(weight_dtype)

    if bias is not None:
        b = bias.reshape(1, N).astype(jnp.float32)
        if Np != N:
            b = jnp.pad(b, ((0, 0), (0, Np - N)))
    else:
        b = None

    return {"wt": wt, "b": b, "N": N, "K": K}
    # TODO(synk): fp8 (v7x) / int8 (v5e, v6e) weight compression with
    # per-channel dequant scales in the epilogue is a further option here.


@functools.partial(jax.jit, static_argnames=("tm", "tn", "tk", "has_bias"))
def _frozen_linear_2d(x_p, wt_p, b_p, *, tm, tn, tk, has_bias):
    Mp, Kp = x_p.shape
    _, Np = wt_p.shape
    grid = (Mp // tm, Np // tn, Kp // tk)

    in_specs = [
        pl.BlockSpec((tm, tk), lambda i, j, k: (i, k)),   # x tile
        pl.BlockSpec((tk, tn), lambda i, j, k: (k, j)),   # pre-transposed weight
    ]
    inputs = (x_p, wt_p)
    if has_bias:
        in_specs.append(pl.BlockSpec((1, tn), lambda i, j, k: (0, j)))
        inputs = inputs + (b_p,)
        kernel = _fl_kernel_bias
    else:
        kernel = _fl_kernel_nobias

    # Double-buffered operands + double-buffered f32 output + headroom.
    vmem_bytes = (
        2 * tm * tk * x_p.dtype.itemsize
        + 2 * tk * tn * wt_p.dtype.itemsize
        + 2 * tm * tn * 4
        + 2 * tn * 4
        + (4 << 20)
    )
    vmem_bytes = min(vmem_bytes, 56 << 20)   # stay under v7x 64 MiB physical

    cost = pl.CostEstimate(
        flops=2 * Mp * Np * Kp,
        transcendentals=0,
        bytes_accessed=(
            Mp * Kp * x_p.dtype.itemsize
            + Kp * Np * wt_p.dtype.itemsize
            + Mp * Np * 4
            + (Np * 4 if has_bias else 0)
        ),
    )

    return pl.pallas_call(
        kernel,
        out_shape=jax.ShapeDtypeStruct((Mp, Np), jnp.float32),
        grid_spec=pltpu.PrefetchScalarGridSpec(
            num_scalar_prefetch=0,
            grid=grid,
            in_specs=in_specs,
            out_specs=pl.BlockSpec((tm, tn), lambda i, j, k: (i, j)),
        ),
        compiler_params=pltpu.CompilerParams(
            # M, N tiles independent -> parallel (2-TC sharding on v7x);
            # K is the reduction (output resident) -> arbitrary.
            dimension_semantics=("parallel", "parallel", "arbitrary"),
            vmem_limit_bytes=vmem_bytes,
        ),
        cost_estimate=cost,
    )(*inputs)


def frozen_linear_forward(x, params, *, tm=512, tn=512, tk=2048):
    """Pallas TPU equivalent of FrozenLinear.forward (adapter=None).

    `params` comes from prepare_frozen_linear (weight prep is one-time)."""
    wt, b, N, K = params["wt"], params["b"], params["N"], params["K"]
    Kp, Np = wt.shape
    assert x.shape[-1] == K, (x.shape, K)
    leading = x.shape[:-1]
    orig_dtype = x.dtype

    compute_dtype = wt.dtype
    x2 = x.reshape(-1, K).astype(compute_dtype)
    M = x2.shape[0]

    # Tile clamping. Sublane minimum depends on dtype (8 f32, 16 bf16).
    sub = 16 if compute_dtype == jnp.bfloat16 else 8
    tm = _round_up(min(tm, _round_up(M, sub)), sub)
    Mp = _round_up(M, tm)
    tn = _pick_tile(Np, tn, 128)
    tk = _pick_tile(Kp, tk, 128)

    # v7x megacore: if M gives a single tile, make the N axis split >= 2 ways.
    if Mp // tm == 1 and Np // tn < 2 and Np >= 256:
        tn = _pick_tile(Np, max(128, Np // 2), 128)

    # Only x is padded per call (zeros are inert in the contraction).
    if (Mp, Kp) != (M, K):
        x2 = jnp.pad(x2, ((0, Mp - M), (0, Kp - K)))

    out_p = _frozen_linear_2d(
        x2, wt, b, tm=tm, tn=tn, tk=tk, has_bias=b is not None
    )
    out = out_p[:M, :N].reshape(*leading, N)
    return out.astype(orig_dtype)


if __name__ == "__main__":
    key = jax.random.PRNGKey(0)
    k_w, k_b, k_x = jax.random.split(key, 3)

    # Module shapes: weight (out_features, in_features), bias (out_features,)
    B, S = 2, 8
    in_features, out_features = 128, 256

    weight = jax.random.normal(k_w, (out_features, in_features), dtype=jnp.float32)
    bias = jax.random.normal(k_b, (out_features,), dtype=jnp.float32)
    x = jax.random.normal(k_x, (B, S, in_features), dtype=jnp.float32)

    ref = jnp.einsum("bsk,nk->bsn", x, weight) + bias
    ref_nb = jnp.einsum("bsk,nk->bsn", x, weight)

    # --- f32 path (matches the PyTorch module's numerics) -------------------
    params = prepare_frozen_linear(weight, bias)                # one-time prep
    out = jax.block_until_ready(frozen_linear_forward(x, params))
    assert out.shape == (B, S, out_features), out.shape
    assert jnp.allclose(out, ref, atol=1e-3, rtol=1e-3), float(
        jnp.max(jnp.abs(out - ref))
    )

    # --- bias=None path ------------------------------------------------------
    params_nb = prepare_frozen_linear(weight, None)
    out_nb = jax.block_until_ready(frozen_linear_forward(x, params_nb))
    assert jnp.allclose(out_nb, ref_nb, atol=1e-3, rtol=1e-3), float(
        jnp.max(jnp.abs(out_nb - ref_nb))
    )

    # --- bf16 weight path (inference lever; looser tolerance vs f32 ref) ----
    params_bf16 = prepare_frozen_linear(weight, bias, weight_dtype=jnp.bfloat16)
    out_bf16 = jax.block_until_ready(frozen_linear_forward(x, params_bf16))
    assert jnp.allclose(out_bf16, ref, atol=5e-1, rtol=5e-2), float(
        jnp.max(jnp.abs(out_bf16 - ref))
    )

    print("KERNEL_OK")
</pallas_src>

<mosaic_0001>
module attributes {stable_mosaic.version = 11 : i64} {
  func.func @_fl_kernel_bias(%arg0: i32, %arg1: i32, %arg2: i32, %arg3: memref<16x128xf32, #tpu.memory_space<vmem>>, %arg4: memref<128x128xf32, #tpu.memory_space<vmem>>, %arg5: memref<1x128xf32, #tpu.memory_space<vmem>>, %arg6: memref<16x128xf32, #tpu.memory_space<vmem>>) attributes {dimension_semantics = [#tpu.dimension_semantics<parallel>, #tpu.dimension_semantics<parallel>, #tpu.dimension_semantics<arbitrary>], iteration_bounds = array<i64: 1, 2, 1>, scalar_prefetch = 0 : i64, scratch_operands = 0 : i64, tpu.core_type = #tpu.core_type<tc>, window_params = [{transform_indices = @transform_0, window_bounds = array<i64: 16, 128>}, {transform_indices = @transform_1, window_bounds = array<i64: 128, 128>}, {transform_indices = @transform_2, window_bounds = array<i64: 1, 128>}, {transform_indices = @transform_3, window_bounds = array<i64: 16, 128>}]} {
    %c0 = arith.constant 0 : index
    %c0_0 = arith.constant 0 : index
    %0 = vector.load %arg3[%c0, %c0_0] : memref<16x128xf32, #tpu.memory_space<vmem>>, vector<16x128xf32>
    %c0_1 = arith.constant 0 : index
    %c0_2 = arith.constant 0 : index
    %1 = vector.load %arg4[%c0_1, %c0_2] : memref<128x128xf32, #tpu.memory_space<vmem>>, vector<128x128xf32>
    %cst = arith.constant dense<0.000000e+00> : vector<16x128xf32>
    %2 = tpu.matmul %0, %1, %cst {dimension_numbers = #tpu.dot_dimension_numbers<[1], [0], [0], [1], [0, 0, 1, 1], [], []>} : vector<16x128xf32>, vector<128x128xf32>, vector<16x128xf32> -> vector<16x128xf32>
    %c0_i32 = arith.constant 0 : i32
    %3 = arith.cmpi eq, %arg2, %c0_i32 : i32
    %4 = arith.extui %3 : i1 to i32
    %c0_i32_3 = arith.constant 0 : i32
    %5 = arith.cmpi ne, %4, %c0_i32_3 : i32
    scf.if %5 {
      %c0_6 = arith.constant 0 : index
      %c0_7 = arith.constant 0 : index
      %9 = vector.load %arg5[%c0_6, %c0_7] : memref<1x128xf32, #tpu.memory_space<vmem>>, vector<1x128xf32>
      %10 = vector.broadcast %9 : vector<1x128xf32> to vector<16x128xf32>
      %11 = arith.addf %2, %10 : vector<16x128xf32>
      %c0_8 = arith.constant 0 : index
      %c0_9 = arith.constant 0 : index
      %12 = vector.load %arg6[%c0_8, %c0_9] : memref<16x128xf32, #tpu.memory_space<vmem>>, vector<16x128xf32>
      tpu.vector_store %arg6[%c0_8, %c0_9], %11 {strides = array<i32>} : memref<16x128xf32, #tpu.memory_space<vmem>>, vector<16x128xf32>,
    } else {
    }
    %c0_i32_4 = arith.constant 0 : i32
    %6 = arith.cmpi sgt, %arg2, %c0_i32_4 : i32
    %7 = arith.extui %6 : i1 to i32
    %c0_i32_5 = arith.constant 0 : i32
    %8 = arith.cmpi ne, %7, %c0_i32_5 : i32
    scf.if %8 {
      %c0_6 = arith.constant 0 : index
      %c0_7 = arith.constant 0 : index
      %9 = vector.load %arg6[%c0_6, %c0_7] : memref<16x128xf32, #tpu.memory_space<vmem>>, vector<16x128xf32>
      %10 = arith.addf %9, %2 : vector<16x128xf32>
      %c0_8 = arith.constant 0 : index
      %c0_9 = arith.constant 0 : index
      %11 = vector.load %arg6[%c0_8, %c0_9] : memref<16x128xf32, #tpu.memory_space<vmem>>, vector<16x128xf32>
      tpu.vector_store %arg6[%c0_8, %c0_9], %10 {strides = array<i32>} : memref<16x128xf32, #tpu.memory_space<vmem>>, vector<16x128xf32>,
    } else {
    }
    return
  }
  func.func @transform_0(%arg0: i32, %arg1: i32, %arg2: i32) -> (i32, i32) {
    %c0_i32 = arith.constant 0 : i32
    return %arg0, %arg2 : i32, i32
  }
  func.func @transform_1(%arg0: i32, %arg1: i32, %arg2: i32) -> (i32, i32) {
    %c0_i32 = arith.constant 0 : i32
    return %arg2, %arg1 : i32, i32
  }
  func.func @transform_2(%arg0: i32, %arg1: i32, %arg2: i32) -> (i32, i32) {
    %c0_i32 = arith.constant 0 : i32
    %c0_i32_0 = arith.constant 0 : i32
    return %c0_i32, %arg1 : i32, i32
  }
  func.func @transform_3(%arg0: i32, %arg1: i32, %arg2: i32) -> (i32, i32) {
    %c0_i32 = arith.constant 0 : i32
    return %arg0, %arg1 : i32, i32
  }
}

</mosaic_0001>

<llo_original>
// kernel: _frozen_linear_2d.1
$region0: #{_frozen_linear_2d.1}
  #allocation0 [shape = 'u32[]', space=smem, size = 0x4, offset = 0x4, fixed_abs, tag = 'smem constant byte address 0x4 - core index']
  #allocation1 [shape = 'u32[72,128]{1,0:T(1,128)}', space=vmem, size = 0x9000, scoped, tag = 'internal scratch']
  %s0 = inlined_call_operand.hbm [shape: f32[16,128], index: 0, kind: input, shape index: {}]
  %s1 = inlined_call_operand.hbm [shape: f32[128,256], index: 1, kind: input, shape index: {}]
  %s2 = inlined_call_operand.hbm [shape: f32[1,256], index: 2, kind: input, shape index: {}]
  %s3 = inlined_call_operand.hbm [shape: f32[16,256], index: 3, kind: output, shape index: {}]
  %s4 = sld [smem:[#allocation0]]
  $region65: #{_frozen_linear_2d.1} parent=0
    _
  %s6 = ssub.s32 1, %s4
  %s7 = scalar_select 0, %s6, %s4
  $region1: #{_frozen_linear_2d.1} parent=0
    #allocation2 [shape = 'u8[8192]{0}', space=vmem, size = 0x2000, scoped, tag = 'input window, operand 0, single buffered']
    #allocation3 [shape = 's32[2]{0}', space=sflag, size = 0x8, scoped, tag = 'scoped memory for _frozen_linear_2d.1']
    #allocation4 [shape = 's32[2]{0}', space=sflag, size = 0x8, scoped, tag = 'scoped memory for _frozen_linear_2d.1']
    #allocation5 [shape = 'u8[131072]{0}', space=vmem, size = 0x20000, scoped, tag = 'input window, operand 1']
    #allocation6 [shape = 's32[2]{0}', space=sflag, size = 0x8, scoped, tag = 'scoped memory for _frozen_linear_2d.1']
    #allocation7 [shape = 'u8[1024]{0}', space=vmem, size = 0x400, scoped, tag = 'input window, operand 2']
    #allocation8 [shape = 'u8[16384]{0}', space=vmem, size = 0x4000, scoped, tag = 'output window, operand 0']
    %8 = vsyncpa [#allocation3], 0
    %9 = vsyncpa [#allocation6], 0
    %s10 = scalar_lea.sflag [#allocation6], 1
    %11 = vsyncpa %s10, 0
    %12 = vsyncpa [#allocation4], 0
    %s13 = scalar_lea.sflag [#allocation4], 1
    %14 = vsyncpa %s13, 0
    loop: start=0, step=1, limit=4
    $region2: #{_frozen_linear_2d.1} parent=1 // loop_pre_header
      _
    $region3: #{_frozen_linear_2d.1} parent=1 // loop_header
      %s16 = sphi 0, %s20
      %p17 = scmp.ge.s32.totalorder %s16, 4
      %s23 = sphi 0, %s42
      %s24 = sphi 0, %s38
      %s25 = sphi 0, %s34
      %s26 = sphi 0, %s23
      %s27 = sphi 0, %s24
      %s28 = sphi 0, %s25
      %s29 = sphi 0, %s26
      %s30 = sphi 0, %s27
      %s31 = sphi 0, %s28
      %s47 = sphi 0, %s49
      %s50 = sphi 0, %s47
      %s51 = sphi 0, %s50
      %s67 = sphi 0, %s51
      %s75 = sphi 0, %s77
      %s78 = sphi 0, %s75
      %s79 = sphi 0, %s78
      %s95 = sphi 0, %s79
      %s101 = sphi 0, %s103
      %s104 = sphi 0, %s101
      %s105 = sphi 0, %s104
      %s121 = sphi 0, %s105
      %s129 = sphi 0, %s131
      %s132 = sphi 0, %s129
      %s133 = sphi 0, %s132
      %s149 = sphi 0, %s133
    $region4: #{_frozen_linear_2d.1} parent=1 // loop_header_branch
      %19 = sbr.rel (%p17) target = $region8
    $region5: #{_frozen_linear_2d.1} parent=1 // loop_body
      %s21 = ssub.s32 %s16, 1
      %s22 = ssub.s32 %s16, 2
      %s32 = sadd.s32 1, %s25
      %p33 = scmp.ge.s32.totalorder %s32, 1
      %s34 = scalar_select %p33, 0, %s32
      %s35 = sadd.s32 1, %s24
      %s36 = scalar_select %p33, %s35, %s24
      %p37 = scmp.ge.s32.totalorder %s36, 2
      %s38 = scalar_select %p37, 0, %s36
      %s39 = sadd.s32 1, %s23
      %s40 = scalar_select %p37, %s39, %s23
      %p41 = scmp.ge.s32.totalorder %s40, 1
      %s42 = scalar_select %p41, 0, %s40
      %s43 = ssub.s32 %s23, %s42
      %s44 = ssub.s32 %s25, %s34
      %s45 = sor.u32 %s43, %s44
      %p46 = scmp.eq.s32.totalorder %s45, 0
      %s48 = sadd.s32 %s47, 1
      %s49 = scalar_select %p46, %s47, %s48
      %p52 = pneg %p46
      %p53 = scmp.eq.s32.totalorder %s16, 1
      %p54 = por %p52, %p53
      %p55 = scmp.ne.s32.totalorder %s47, %s50
      %p56 = scmp.eq.s32.totalorder %s16, 0
      %p57 = por %p55, %p56
      %p58 = scmp.ne.s32.totalorder %s47, %s50
      %p59 = scmp.eq.s32.totalorder %s21, 1
      %p60 = por %p58, %p59
      %p61 = scmp.ne.s32.totalorder %s50, %s51
      %p62 = scmp.eq.s32.totalorder %s21, 0
      %p63 = por %p61, %p62
      %p64 = scmp.ne.s32.totalorder %s50, %s51
      %p65 = scmp.eq.s32.totalorder %s22, 1
      %p66 = por %p64, %p65
      %p68 = scmp.ne.s32.totalorder %s51, %s67
      %p69 = scmp.eq.s32.totalorder %s22, 0
      %p70 = por %p68, %p69
      %s71 = ssub.s32 %s25, %s34
      %s72 = ssub.s32 %s24, %s38
      %s73 = sor.u32 %s71, %s72
      %p74 = scmp.eq.s32.totalorder %s73, 0
      %s76 = sadd.s32 %s75, 1
      %s77 = scalar_select %p74, %s75, %s76
      %p80 = pneg %p74
      %p81 = scmp.eq.s32.totalorder %s16, 1
      %p82 = por %p80, %p81
      %p83 = scmp.ne.s32.totalorder %s75, %s78
      %p84 = scmp.eq.s32.totalorder %s16, 0
      %p85 = por %p83, %p84
      %p86 = scmp.ne.s32.totalorder %s75, %s78
      %p87 = scmp.eq.s32.totalorder %s21, 1
      %p88 = por %p86, %p87
      %p89 = scmp.ne.s32.totalorder %s78, %s79
      %p90 = scmp.eq.s32.totalorder %s21, 0
      %p91 = por %p89, %p90
      %p92 = scmp.ne.s32.totalorder %s78, %s79
      %p93 = scmp.eq.s32.totalorder %s22, 1
      %p94 = por %p92, %p93
      %p96 = scmp.ne.s32.totalorder %s79, %s95
      %p97 = scmp.eq.s32.totalorder %s22, 0
      %p98 = por %p96, %p97
      %s99 = ssub.s32 %s24, %s38
      %p100 = scmp.eq.s32.totalorder %s99, 0
      %s102 = sadd.s32 %s101, 1
      %s103 = scalar_select %p100, %s101, %s102
      %p106 = pneg %p100
      %p107 = scmp.eq.s32.totalorder %s16, 1
      %p108 = por %p106, %p107
      %p109 = scmp.ne.s32.totalorder %s101, %s104
      %p110 = scmp.eq.s32.totalorder %s16, 0
      %p111 = por %p109, %p110
      %p112 = scmp.ne.s32.totalorder %s101, %s104
      %p113 = scmp.eq.s32.totalorder %s21, 1
      %p114 = por %p112, %p113
      %p115 = scmp.ne.s32.totalorder %s104, %s105
      %p116 = scmp.eq.s32.totalorder %s21, 0
      %p117 = por %p115, %p116
      %p118 = scmp.ne.s32.totalorder %s104, %s105
      %p119 = scmp.eq.s32.totalorder %s22, 1
      %p120 = por %p118, %p119
      %p122 = scmp.ne.s32.totalorder %s105, %s121
      %p123 = scmp.eq.s32.totalorder %s22, 0
      %p124 = por %p122, %p123
      %s125 = ssub.s32 %s23, %s42
      %s126 = ssub.s32 %s24, %s38
      %s127 = sor.u32 %s125, %s126
      %p128 = scmp.eq.s32.totalorder %s127, 0
      %s130 = sadd.s32 %s129, 1
      %s131 = scalar_select %p128, %s129, %s130
      %p134 = pneg %p128
      %p135 = scmp.eq.s32.totalorder %s16, 1
      %p136 = por %p134, %p135
      %p137 = scmp.ne.s32.totalorder %s129, %s132
      %p138 = scmp.eq.s32.totalorder %s16, 0
      %p139 = por %p137, %p138
      %p140 = scmp.ne.s32.totalorder %s129, %s132
      %p141 = scmp.eq.s32.totalorder %s21, 1
      %p142 = por %p140, %p141
      %p143 = scmp.ne.s32.totalorder %s132, %s133
      %p144 = scmp.eq.s32.totalorder %s21, 0
      %p145 = por %p143, %p144
      %p146 = scmp.ne.s32.totalorder %s132, %s133
      %p147 = scmp.eq.s32.totalorder %s22, 1
      %p148 = por %p146, %p147
      %p150 = scmp.ne.s32.totalorder %s133, %s149
      %p151 = scmp.eq.s32.totalorder %s22, 0
      %p152 = por %p150, %p151
      %p153 = scmp.le.s32.totalorder 1, %s16
      %p154 = scmp.lt.s32.totalorder %s16, 3
      %p155 = pnand %p153, %p154
      %p156 = pneg %p155
      // Predicated region
      $region9: #{_frozen_linear_2d.1} parent=5 // pred_check
        _
      $region10: #{_frozen_linear_2d.1} parent=5 // pred_check_branch
        %158 = sbr.rel (%p155) target = $region12
      $region11: #{_frozen_linear_2d.1} parent=5 // pred_region
        %s159 = ssub.s32 %s16, 1
        // Predicated region
        $region13: #{_frozen_linear_2d.1} parent=11 // pred_check
          %p160 = pneg %p63
        $region14: #{_frozen_linear_2d.1} parent=11 // pred_check_branch
          %162 = sbr.rel (%p160) target = $region16
        $region15: #{_frozen_linear_2d.1} parent=11 // pred_region
          %s163 = smul.u32 2, %s26
          %165 = vsyncadd [#allocation3], 0
          %s166 = sadd.s32 %s28, %s163
          %s167 = smul.addr %s166, 8
          %s168 = scalar_lea.hbm %s0, %s167
          %s169 = sshll.u32 %s168, 4
          %s170 = int_to_ptr.hbm [resolvable:$true] %s169
          %s171 = sshll.u32 [#allocation2], 4
          %s172 = int_to_ptr.vmem [resolvable:$true] %s171
          %177 = dma.hbm_to_vmem [thread:$0]  %s170, 256, %s172, [#allocation3], 128, 128, 8
        $region16: #{_frozen_linear_2d.1} parent=11 // pred_fallthru
          _
      $region12: #{_frozen_linear_2d.1} parent=5 // pred_fallthru
        _
      %p178 = scmp.lt.s32.totalorder %s16, 2
      // Predicated region
      $region17: #{_frozen_linear_2d.1} parent=5 // pred_check
        %p179 = pneg %p178
      $region18: #{_frozen_linear_2d.1} parent=5 // pred_check_branch
        %181 = sbr.rel (%p179) target = $region20
      $region19: #{_frozen_linear_2d.1} parent=5 // pred_region
        // Predicated region
        $region21: #{_frozen_linear_2d.1} parent=19 // pred_check
          %p182 = pneg %p85
        $region22: #{_frozen_linear_2d.1} parent=19 // pred_check_branch
          %184 = sbr.rel (%p182) target = $region24
        $region23: #{_frozen_linear_2d.1} parent=19 // pred_region
          %s185 = sand.u32 %s16, 1
          %s186 = scalar_lea.sflag [#allocation6], %s185
          %s187 = sand.u32 %s75, 1
          %s188 = smul.addr %s187, 128
          %s189 = scalar_lea.vmem [#allocation5], %s188
          %s190 = smul.u32 16, %s25
          %192 = vsyncadd %s186, 0
          %s193 = smul.addr %s190, 2
          %s194 = sadd.s32 %s24, %s193
          %s195 = smul.addr %s194, 8
          %s196 = scalar_lea.hbm %s1, %s195
          %s197 = sshll.u32 %s196, 4
          %s198 = int_to_ptr.hbm [resolvable:$true] %s197
          %s199 = sshll.u32 %s189, 4
          %s200 = int_to_ptr.vmem [resolvable:$true] %s199
          %205 = dma.hbm_to_vmem [thread:$0]  %s198, 2048, %s200, %s186, 256, 128, 8
        $region24: #{_frozen_linear_2d.1} parent=19 // pred_fallthru
          _
        // Predicated region
        $region25: #{_frozen_linear_2d.1} parent=19 // pred_check
          %p206 = pneg %p111
        $region26: #{_frozen_linear_2d.1} parent=19 // pred_check_branch
          %208 = sbr.rel (%p206) target = $region28
        $region27: #{_frozen_linear_2d.1} parent=19 // pred_region
          %s209 = sand.u32 %s16, 1
          %s210 = scalar_lea.sflag [#allocation6], %s209
          %s211 = sand.u32 %s101, 1
          %s212 = scalar_lea.vmem [#allocation7], %s211
          %214 = vsyncadd %s210, 0
          %s215 = scalar_lea.hbm %s2, %s24
          %s217 = sshll.u32 %s215, 4
          %s218 = int_to_ptr.hbm [resolvable:$true] %s217
          %s219 = sshll.u32 %s212, 4
          %s220 = int_to_ptr.vmem [resolvable:$true] %s219
          %222 = dma.hbm_to_vmem [thread:$0]  %s218, 16, %s220, %s210
        $region28: #{_frozen_linear_2d.1} parent=19 // pred_fallthru
          _
      $region20: #{_frozen_linear_2d.1} parent=5 // pred_fallthru
        _
      %p223 = scmp.le.s32.totalorder 1, %s16
      %p224 = scmp.lt.s32.totalorder %s16, 3
      %p225 = pnand %p223, %p224
      %p226 = pneg %p225
      // Predicated region
      $region29: #{_frozen_linear_2d.1} parent=5 // pred_check
        _
      $region30: #{_frozen_linear_2d.1} parent=5 // pred_check_branch
        %228 = sbr.rel (%p225) target = $region32
      $region31: #{_frozen_linear_2d.1} parent=5 // pred_region
        %s229 = ssub.s32 %s16, 1
        // Predicated region
        $region33: #{_frozen_linear_2d.1} parent=31 // pred_check
          %p230 = pneg %p63
        $region34: #{_frozen_linear_2d.1} parent=31 // pred_check_branch
          %232 = sbr.rel (%p230) target = $region36
        $region35: #{_frozen_linear_2d.1} parent=31 // pred_region
          %234 = dma.done [#allocation3], 256
        $region36: #{_frozen_linear_2d.1} parent=31 // pred_fallthru
          _
        %s235 = sand.u32 %s21, 1
        %s236 = scalar_lea.sflag [#allocation6], %s235
        %s237 = sand.u32 %s78, 1
        %s238 = smul.addr %s237, 128
        %s239 = scalar_lea.vmem [#allocation5], %s238
        // Predicated region
        $region37: #{_frozen_linear_2d.1} parent=31 // pred_check
          %p240 = pneg %p91
        $region38: #{_frozen_linear_2d.1} parent=31 // pred_check_branch
          %242 = sbr.rel (%p240) target = $region40
        $region39: #{_frozen_linear_2d.1} parent=31 // pred_region
          %244 = dma.done %s236, 2048
        $region40: #{_frozen_linear_2d.1} parent=31 // pred_fallthru
          _
        %s245 = sand.u32 %s21, 1
        %s246 = scalar_lea.sflag [#allocation6], %s245
        %s247 = sand.u32 %s104, 1
        %s248 = scalar_lea.vmem [#allocation7], %s247
        // Predicated region
        $region41: #{_frozen_linear_2d.1} parent=31 // pred_check
          %p249 = pneg %p117
        $region42: #{_frozen_linear_2d.1} parent=31 // pred_check_branch
          %251 = sbr.rel (%p249) target = $region44
        $region43: #{_frozen_linear_2d.1} parent=31 // pred_region
          %253 = dma.done %s246, 16
        $region44: #{_frozen_linear_2d.1} parent=31 // pred_fallthru
          _
        %p254 = pneg %p63
        %p255 = pneg %p60
        %s256 = sand.u32 %s21, 1
        %s257 = scalar_lea.sflag [#allocation6], %s256
        %s258 = sand.u32 %s78, 1
        %s259 = smul.addr %s258, 128
        %s260 = scalar_lea.vmem [#allocation5], %s259
        %p261 = pneg %p91
        %p262 = pneg %p88
        %s263 = sand.u32 %s21, 1
        %s264 = scalar_lea.sflag [#allocation6], %s263
        %s265 = sand.u32 %s104, 1
        %s266 = scalar_lea.vmem [#allocation7], %s265
        %p267 = pneg %p117
        %p268 = pneg %p114
        %p269 = pneg %p145
        %p270 = pneg %p142
        %s271 = sand.u32 %s132, 1
        %s272 = scalar_lea.sflag [#allocation4], %s271
        %s273 = sand.u32 %s132, 1
        %s274 = smul.addr %s273, 16
        %s275 = scalar_lea.vmem [#allocation8], %s274
        %s276 = smul.u32 2, %s26
        %s277 = smul.u32 16, %s28
        %s278 = smul.u32 2, %s26
        %v279 = vld [vmem:[#allocation2] sm:$0xff]
        %v280 = vld [vmem:[#allocation2 + $0x8] sm:$0xff]
        %v281 = vld [vmem:[%s239] sm:$0xff]
        %v282 = vld [vmem:[%s239 + $0x8] sm:$0xff]
        %v283 = vld [vmem:[%s239 + $0x10] sm:$0xff]
        %v284 = vld [vmem:[%s239 + $0x18] sm:$0xff]
        %v285 = vld [vmem:[%s239 + $0x20] sm:$0xff]
        %v286 = vld [vmem:[%s239 + $0x28] sm:$0xff]
        %v287 = vld [vmem:[%s239 + $0x30] sm:$0xff]
        %v288 = vld [vmem:[%s239 + $0x38] sm:$0xff]
        %v289 = vld [vmem:[%s239 + $0x40] sm:$0xff]
        %v290 = vld [vmem:[%s239 + $0x48] sm:$0xff]
        %v291 = vld [vmem:[%s239 + $0x50] sm:$0xff]
        %v292 = vld [vmem:[%s239 + $0x58] sm:$0xff]
        %v293 = vld [vmem:[%s239 + $0x60] sm:$0xff]
        %v294 = vld [vmem:[%s239 + $0x68] sm:$0xff]
        %v295 = vld [vmem:[%s239 + $0x70] sm:$0xff]
        %v296 = vld [vmem:[%s239 + $0x78] sm:$0xff]
        %297 = vmatpush.msra.mxu0 %v296
        %298 = vmatpush.msra.mxu0 %v295
        %299 = vmatpush.msra.mxu0 %v294
        %300 = vmatpush.msra.mxu0 %v293
        %301 = vmatpush.msra.mxu0 %v292
        %302 = vmatpush.msra.mxu0 %v291
        %303 = vmatpush.msra.mxu0 %v290
        %304 = vmatpush.msra.mxu0 %v289
        %305 = vmatpush.msra.mxu0 %v288
        %306 = vmatpush.msra.mxu0 %v287
        %307 = vmatpush.msra.mxu0 %v286
        %308 = vmatpush.msra.mxu0 %v285
        %309 = vmatpush.msra.mxu0 %v284
        %310 = vmatpush.msra.mxu0 %v283
        %311 = vmatpush.msra.mxu0 %v282
        %312 = vmatpush.msra.mxu0 %v281
        %313 = vmatmul.f32.gmra.mxu0 %v279
        %v314 = vpop.f32.mrf.mxu0
        %v315 = vadd.f32 0.0, %v314
        %316 = vmatmul.f32.gmra.mxu0 %v280
        %v317 = vpop.f32.mrf.mxu0
        %v318 = vadd.f32 0.0, %v317
        %319 = vdwg.mxu0
        %p320 = scmp.eq.s32.totalorder %s28, 0
        // Predicated region
        $region45: #{_frozen_linear_2d.1} parent=31 // pred_check
          %p321 = pneg %p320
        $region46: #{_frozen_linear_2d.1} parent=31 // pred_check_branch
          %323 = sbr.rel (%p321) target = $region48
        $region47: #{_frozen_linear_2d.1} parent=31 // pred_region
          %v324 = vld [vmem:[%s248] sm:$0x1]
          %v326 = vperm.slane %v324, 0
          %v328 = vadd.f32 %v315, %v326
          %v329 = vadd.f32 %v318, %v326
          %330 = vst [vmem:[%s275] sm:$0xff] %v328
          %331 = vst [vmem:[%s275 + $0x8] sm:$0xff] %v329
        $region48: #{_frozen_linear_2d.1} parent=31 // pred_fallthru
          _
        %p332 = scmp.gt.s32.totalorder %s28, 0
        // Predicated region
        $region49: #{_frozen_linear_2d.1} parent=31 // pred_check
          %p333 = pneg %p332
        $region50: #{_frozen_linear_2d.1} parent=31 // pred_check_branch
          %335 = sbr.rel (%p333) target = $region52
        $region51: #{_frozen_linear_2d.1} parent=31 // pred_region
          %v336 = vld [vmem:[%s275] sm:$0xff]
          %v337 = vld [vmem:[%s275 + $0x8] sm:$0xff]
          %v338 = vadd.f32 %v336, %v315
          %v339 = vadd.f32 %v337, %v318
          %340 = vst [vmem:[%s275] sm:$0xff] %v338
          %341 = vst [vmem:[%s275 + $0x8] sm:$0xff] %v339
        $region52: #{_frozen_linear_2d.1} parent=31 // pred_fallthru
          _
        %s342 = sand.u32 %s132, 1
        %s343 = scalar_lea.sflag [#allocation4], %s342
        %s344 = sand.u32 %s132, 1
        %s345 = smul.addr %s344, 16
        %s346 = scalar_lea.vmem [#allocation8], %s345
        // Predicated region
        $region53: #{_frozen_linear_2d.1} parent=31 // pred_check
          %p347 = pneg %p142
        $region54: #{_frozen_linear_2d.1} parent=31 // pred_check_branch
          %349 = sbr.rel (%p347) target = $region56
        $region55: #{_frozen_linear_2d.1} parent=31 // pred_region
          %s350 = smul.u32 2, %s26
          %352 = vsyncadd %s343, 0
          %s353 = smul.addr %s350, 2
          %s354 = sadd.s32 %s27, %s353
          %s355 = smul.addr %s354, 8
          %s356 = scalar_lea.hbm %s3, %s355
          %s357 = sshll.u32 %s346, 4
          %s358 = int_to_ptr.vmem [resolvable:$true] %s357
          %s359 = sshll.u32 %s356, 4
          %s360 = int_to_ptr.hbm [resolvable:$true] %s359
          %365 = dma.vmem_to_hbm [thread:$0]  %s358, 256, %s360, %s343, 128, 256, 8
        $region56: #{_frozen_linear_2d.1} parent=31 // pred_fallthru
          _
      $region32: #{_frozen_linear_2d.1} parent=5 // pred_fallthru
        _
      %p366 = scmp.le.s32.totalorder 2, %s16
      // Predicated region
      $region57: #{_frozen_linear_2d.1} parent=5 // pred_check
        %p367 = pneg %p366
      $region58: #{_frozen_linear_2d.1} parent=5 // pred_check_branch
        %369 = sbr.rel (%p367) target = $region60
      $region59: #{_frozen_linear_2d.1} parent=5 // pred_region
        %s370 = ssub.s32 %s16, 2
        // Predicated region
        $region61: #{_frozen_linear_2d.1} parent=59 // pred_check
          %p371 = pneg %p148
        $region62: #{_frozen_linear_2d.1} parent=59 // pred_check_branch
          %373 = sbr.rel (%p371) target = $region64
        $region63: #{_frozen_linear_2d.1} parent=59 // pred_region
          %s374 = sand.u32 %s133, 1
          %s375 = scalar_lea.sflag [#allocation4], %s374
          %s376 = sand.u32 %s133, 1
          %s377 = smul.addr %s376, 16
          %s378 = scalar_lea.vmem [#allocation8], %s377
          %380 = dma.done %s375, 256
        $region64: #{_frozen_linear_2d.1} parent=59 // pred_fallthru
          _
      $region60: #{_frozen_linear_2d.1} parent=5 // pred_fallthru
        _
    $region6: #{_frozen_linear_2d.1} parent=1 // loop_footer
      %s20 = sadd.s32 1, %s16
    $region7: #{_frozen_linear_2d.1} parent=1 // loop_footer_branch
      %15 = sbr.rel target = $region3
    $region8: #{_frozen_linear_2d.1} parent=1 // loop_exit
      _
    %381 = vsyncpa [#allocation3], 1
    %s382 = scalar_lea.sflag [#allocation3], 1
    %383 = vsyncpa %s382, 1
    %384 = vsyncpa [#allocation6], 1
    %s385 = scalar_lea.sflag [#allocation6], 1
    %386 = vsyncpa %s385, 1
    %387 = vsyncpa [#allocation4], 1
    %s388 = scalar_lea.sflag [#allocation4], 1
    %389 = vsyncpa %s388, 1

</llo_original>
